<compile_context>
chip_gen: v5e
topology: v5e:2x2
jax: 0.10.0
libtpu: 0.0.40
codegen_flags: <defaults>
</compile_context>

<pallas_src>
import jax
import jax.numpy as jnp
import numpy as np
from jax.experimental import pallas as pl
from jax.experimental.pallas import tpu as pltpu

BN_EPS = 1e-5
D_PAD = 128          # lane-dense width for input / hidden / output slabs
OUT_DIM = 16         # real output width (fc3)
TB = 128             # batch tile (rows per grid step)


# --------------------------------------------------------------------------
# Kernel: fused (Linear+foldedBN) -> ReLU  x3, fully lane-dense.
# --------------------------------------------------------------------------
def _encoder_kernel(x_ref, w_ref, b_ref, o_ref):
    h = x_ref[...]                                   # (TB, 128) f32
    for layer in range(3):                           # static unroll
        w = w_ref[layer]                             # (128, 128)
        b = b_ref[layer:layer + 1, :]                # (1, 128)
        h = jnp.dot(h, w, preferred_element_type=jnp.float32) + b
        h = jnp.maximum(h, 0.0)
    o_ref[...] = h.astype(o_ref.dtype)


# --------------------------------------------------------------------------
# Host-side parameter prep: fold BN into Linear, pad to 128 lanes, pack.
# --------------------------------------------------------------------------
def fold_and_pack_params(params):
    def fold(w, b, g, be, m, v):
        scale = g / jnp.sqrt(v + BN_EPS)             # (1, out)
        return w * scale, (b - m) * scale + be       # (in, out), (1, out)

    w1, b1 = fold(params["w1"], params["b1"], params["g1"], params["be1"],
                  params["m1"], params["v1"])
    w2, b2 = fold(params["w2"], params["b2"], params["g2"], params["be2"],
                  params["m2"], params["v2"])
    w3, b3 = fold(params["w3"], params["b3"], params["g3"], params["be3"],
                  params["m3"], params["v3"])

    def pad_w(w):
        return jnp.zeros((D_PAD, D_PAD), jnp.float32).at[:w.shape[0], :w.shape[1]].set(w)

    def pad_b(b):
        return jnp.zeros((D_PAD,), jnp.float32).at[:b.shape[-1]].set(b.reshape(-1))

    return {
        "emb_customer": params["emb_customer"],
        "emb_addr": params["emb_addr"],
        "emb_age": params["emb_age"],
        "emb_country": params["emb_country"],
        # Single packed weight / bias slabs (3 layers).
        "w_slab": jnp.stack([pad_w(w1), pad_w(w2), pad_w(w3)], axis=0),  # (3,128,128)
        "b_slab": jnp.stack([pad_b(b1), pad_b(b2), pad_b(b3)], axis=0),  # (3,128)
    }


# --------------------------------------------------------------------------
# Forward wrapper (handles the original scalar path and a batched path).
# --------------------------------------------------------------------------
def customer_encoder_forward(prepared, x_customer, x_addr, x_age, x_country, x_other):
    xo = jnp.asarray(x_other, jnp.float32)
    if xo.ndim == 1:                                 # original single-example path
        xo = xo[None, :]
    xc = jnp.atleast_1d(jnp.asarray(x_customer))
    xa = jnp.atleast_1d(jnp.asarray(x_addr))
    xg = jnp.atleast_1d(jnp.asarray(x_age))
    xn = jnp.atleast_1d(jnp.asarray(x_country))

    # Embedding gathers (glue, plain JAX); concat straight into a lane-dense,
    # zero-padded (B_pad, 128) slab so the kernel only sees dense vregs.
    # TODO(synk): fuse the four gathers into the kernel via scalar-prefetched
    # index vectors (PrefetchScalarGridSpec + pl.Element) to skip this HBM bounce.
    feats = [
        prepared["emb_customer"][xc],
        prepared["emb_addr"][xa],
        prepared["emb_age"][xg],
        prepared["emb_country"][xn],
        xo,
    ]
    B = xo.shape[0]
    D = sum(int(f.shape[-1]) for f in feats)
    assert D <= D_PAD, f"concatenated feature width {D} exceeds {D_PAD}"

    n_tiles = (B + TB - 1) // TB
    B_pad = max(TB, n_tiles * TB)
    n_tiles = B_pad // TB

    lane_pad = jnp.zeros((B, D_PAD - D), jnp.float32)
    x = jnp.concatenate(feats + [lane_pad], axis=-1)           # (B, 128)
    if B_pad != B:
        x = jnp.concatenate([x, jnp.zeros((B_pad - B, D_PAD), jnp.float32)], axis=0)

    flops = 2 * B_pad * 3 * D_PAD * D_PAD
    bytes_accessed = (2 * B_pad * D_PAD + 3 * D_PAD * D_PAD + 3 * D_PAD) * 4

    out = pl.pallas_call(
        _encoder_kernel,
        out_shape=jax.ShapeDtypeStruct((B_pad, D_PAD), jnp.float32),
        grid=(n_tiles,),
        in_specs=[
            pl.BlockSpec((TB, D_PAD), lambda i: (i, 0)),            # batch-tiled input
            pl.BlockSpec((3, D_PAD, D_PAD), lambda i: (0, 0, 0)),   # resident weights
            pl.BlockSpec((3, D_PAD), lambda i: (0, 0)),             # resident biases
        ],
        out_specs=pl.BlockSpec((TB, D_PAD), lambda i: (i, 0)),
        compiler_params=pltpu.CompilerParams(
            dimension_semantics=("parallel",)),
        cost_estimate=pl.CostEstimate(
            flops=flops, transcendentals=0, bytes_accessed=bytes_accessed),
    )(x, prepared["w_slab"], prepared["b_slab"])

    return out[:B, :OUT_DIM]                                    # (B, 16)


# --------------------------------------------------------------------------
# Pure-JAX reference (unfolded BN, unpadded) for correctness checking.
# --------------------------------------------------------------------------
def _reference_forward(params, x_customer, x_addr, x_age, x_country, x_other):
    xo = jnp.asarray(x_other, jnp.float32)
    if xo.ndim == 1:
        xo = xo[None, :]
    xc = jnp.atleast_1d(jnp.asarray(x_customer))
    xa = jnp.atleast_1d(jnp.asarray(x_addr))
    xg = jnp.atleast_1d(jnp.asarray(x_age))
    xn = jnp.atleast_1d(jnp.asarray(x_country))

    h = jnp.concatenate(
        [params["emb_customer"][xc], params["emb_addr"][xa],
         params["emb_age"][xg], params["emb_country"][xn], xo], axis=-1)

    def block(h, w, b, g, be, m, v):
        h = h @ w + b
        h = (h - m) / jnp.sqrt(v + BN_EPS) * g + be
        return jnp.maximum(h, 0.0)

    h = block(h, params["w1"], params["b1"], params["g1"], params["be1"],
              params["m1"], params["v1"])
    h = block(h, params["w2"], params["b2"], params["g2"], params["be2"],
              params["m2"], params["v2"])
    h = block(h, params["w3"], params["b3"], params["g3"], params["be3"],
              params["m3"], params["v3"])
    return h


# --------------------------------------------------------------------------
# Parameter init (eval-mode BN stats; Linear weights stored as (in, out)).
# --------------------------------------------------------------------------
def init_params(key, input_size, num_customer, num_addr, num_age, num_country,
                customer_emb_dim, addr_emb_dim, age_emb_dim, country_emb_dim):
    keys = jax.random.split(key, 24)
    d_in = input_size + customer_emb_dim + addr_emb_dim + age_emb_dim + country_emb_dim

    def lin(kw, kb, fan_in, fan_out):
        bound = 1.0 / np.sqrt(fan_in)
        w = jax.random.uniform(kw, (fan_in, fan_out), jnp.float32, -bound, bound)
        b = jax.random.uniform(kb, (1, fan_out), jnp.float32, -bound, bound)
        return w, b

    def bn(kg, kb, km, kv, c):
        g = 1.0 + 0.1 * jax.random.normal(kg, (1, c), jnp.float32)
        be = 0.1 * jax.random.normal(kb, (1, c), jnp.float32)
        m = 0.1 * jax.random.normal(km, (1, c), jnp.float32)
        v = 1.0 + 0.1 * jax.random.uniform(kv, (1, c), jnp.float32)
        return g, be, m, v

    w1, b1 = lin(keys[0], keys[1], d_in, 128)
    w2, b2 = lin(keys[2], keys[3], 128, 64)
    w3, b3 = lin(keys[4], keys[5], 64, 16)
    g1, be1, m1, v1 = bn(keys[6], keys[7], keys[8], keys[9], 128)
    g2, be2, m2, v2 = bn(keys[10], keys[11], keys[12], keys[13], 64)
    g3, be3, m3, v3 = bn(keys[14], keys[15], keys[16], keys[17], 16)

    emb_keys = jax.random.split(keys[18], 4)
    return {
        "emb_customer": jax.random.normal(emb_keys[0], (num_customer, customer_emb_dim), jnp.float32),
        "emb_addr": jax.random.normal(emb_keys[1], (num_addr, addr_emb_dim), jnp.float32),
        "emb_age": jax.random.normal(emb_keys[2], (num_age, age_emb_dim), jnp.float32),
        "emb_country": jax.random.normal(emb_keys[3], (num_country, country_emb_dim), jnp.float32),
        "w1": w1, "b1": b1, "g1": g1, "be1": be1, "m1": m1, "v1": v1,
        "w2": w2, "b2": b2, "g2": g2, "be2": be2, "m2": m2, "v2": v2,
        "w3": w3, "b3": b3, "g3": g3, "be3": be3, "m3": m3, "v3": v3,
    }


if __name__ == "__main__":
    input_size = 8
    num_customer, num_addr, num_age, num_country = 100, 50, 10, 20
    customer_emb_dim, addr_emb_dim, age_emb_dim, country_emb_dim = 16, 8, 4, 4

    key = jax.random.PRNGKey(0)
    k_params, k_other, k_idx = jax.random.split(key, 3)
    params = init_params(
        k_params, input_size, num_customer, num_addr, num_age, num_country,
        customer_emb_dim, addr_emb_dim, age_emb_dim, country_emb_dim,
    )
    prepared = fold_and_pack_params(params)

    # ---- Single-example path (exact original forward semantics) ----
    x_customer = jnp.int32(7)
    x_addr = jnp.int32(3)
    x_age = jnp.int32(5)
    x_country = jnp.int32(11)
    x_other = jax.random.normal(k_other, (input_size,), jnp.float32)

    out1 = jax.block_until_ready(
        customer_encoder_forward(prepared, x_customer, x_addr, x_age, x_country, x_other))
    ref1 = _reference_forward(params, x_customer, x_addr, x_age, x_country, x_other)
    assert out1.shape == (1, 16), out1.shape
    assert np.allclose(np.asarray(out1), np.asarray(ref1), atol=1e-3, rtol=1e-3)

    # ---- Batched path (throughput mode) ----
    B = 64
    ks = jax.random.split(k_idx, 5)
    bc = jax.random.randint(ks[0], (B,), 0, num_customer)
    ba = jax.random.randint(ks[1], (B,), 0, num_addr)
    bg = jax.random.randint(ks[2], (B,), 0, num_age)
    bn_ = jax.random.randint(ks[3], (B,), 0, num_country)
    bo = jax.random.normal(ks[4], (B, input_size), jnp.float32)

    out2 = jax.block_until_ready(
        customer_encoder_forward(prepared, bc, ba, bg, bn_, bo))
    ref2 = _reference_forward(params, bc, ba, bg, bn_, bo)
    assert out2.shape == (B, 16), out2.shape
    assert np.allclose(np.asarray(out2), np.asarray(ref2), atol=1e-3, rtol=1e-3)

    print("KERNEL_OK")
</pallas_src>

<mosaic_0001>
module attributes {stable_mosaic.version = 11 : i64} {
  func.func @_encoder_kernel(%arg0: i32, %arg1: memref<128x128xf32, #tpu.memory_space<vmem>>, %arg2: memref<3x128x128xf32, #tpu.memory_space<vmem>>, %arg3: memref<3x128xf32, #tpu.memory_space<vmem>>, %arg4: memref<128x128xf32, #tpu.memory_space<vmem>>) attributes {dimension_semantics = [#tpu.dimension_semantics<parallel>], iteration_bounds = array<i64: 1>, scalar_prefetch = 0 : i64, scratch_operands = 0 : i64, tpu.core_type = #tpu.core_type<tc>, window_params = [{transform_indices = @transform_0, window_bounds = array<i64: 128, 128>}, {pipeline_mode = #tpu.pipeline_mode<synchronous>, transform_indices = @transform_1, window_bounds = array<i64: 3, 128, 128>}, {pipeline_mode = #tpu.pipeline_mode<synchronous>, transform_indices = @transform_2, window_bounds = array<i64: 3, 128>}, {transform_indices = @transform_3, window_bounds = array<i64: 128, 128>}]} {
    %c0 = arith.constant 0 : index
    %c0_0 = arith.constant 0 : index
    %0 = vector.load %arg1[%c0, %c0_0] : memref<128x128xf32, #tpu.memory_space<vmem>>, vector<128x128xf32>
    %c0_1 = arith.constant 0 : index
    %c0_2 = arith.constant 0 : index
    %c0_3 = arith.constant 0 : index
    %1 = vector.load %arg2[%c0_1, %c0_2, %c0_3] : memref<3x128x128xf32, #tpu.memory_space<vmem>>, vector<1x128x128xf32>
    %2 = vector.shape_cast %1 : vector<1x128x128xf32> to vector<128x128xf32>
    %c0_4 = arith.constant 0 : index
    %c0_5 = arith.constant 0 : index
    %3 = vector.load %arg3[%c0_4, %c0_5] : memref<3x128xf32, #tpu.memory_space<vmem>>, vector<1x128xf32>
    %cst = arith.constant dense<0.000000e+00> : vector<128x128xf32>
    %4 = tpu.matmul %0, %2, %cst {dimension_numbers = #tpu.dot_dimension_numbers<[1], [0], [0], [1], [0, 0, 1, 1], [], []>} : vector<128x128xf32>, vector<128x128xf32>, vector<128x128xf32> -> vector<128x128xf32>
    %5 = vector.broadcast %3 : vector<1x128xf32> to vector<128x128xf32>
    %6 = arith.addf %4, %5 : vector<128x128xf32>
    %cst_6 = arith.constant 0.000000e+00 : f32
    %7 = vector.broadcast %cst_6 : f32 to vector<128x128xf32>
    %8 = arith.maximumf %6, %7 : vector<128x128xf32>
    %c1 = arith.constant 1 : index
    %c0_7 = arith.constant 0 : index
    %c0_8 = arith.constant 0 : index
    %9 = vector.load %arg2[%c1, %c0_7, %c0_8] : memref<3x128x128xf32, #tpu.memory_space<vmem>>, vector<1x128x128xf32>
    %10 = vector.shape_cast %9 : vector<1x128x128xf32> to vector<128x128xf32>
    %c1_9 = arith.constant 1 : index
    %c0_10 = arith.constant 0 : index
    %11 = vector.load %arg3[%c1_9, %c0_10] : memref<3x128xf32, #tpu.memory_space<vmem>>, vector<1x128xf32>
    %cst_11 = arith.constant dense<0.000000e+00> : vector<128x128xf32>
    %12 = tpu.matmul %8, %10, %cst_11 {dimension_numbers = #tpu.dot_dimension_numbers<[1], [0], [0], [1], [0, 0, 1, 1], [], []>} : vector<128x128xf32>, vector<128x128xf32>, vector<128x128xf32> -> vector<128x128xf32>
    %13 = vector.broadcast %11 : vector<1x128xf32> to vector<128x128xf32>
    %14 = arith.addf %12, %13 : vector<128x128xf32>
    %cst_12 = arith.constant 0.000000e+00 : f32
    %15 = vector.broadcast %cst_12 : f32 to vector<128x128xf32>
    %16 = arith.maximumf %14, %15 : vector<128x128xf32>
    %c2 = arith.constant 2 : index
    %c0_13 = arith.constant 0 : index
    %c0_14 = arith.constant 0 : index
    %17 = vector.load %arg2[%c2, %c0_13, %c0_14] : memref<3x128x128xf32, #tpu.memory_space<vmem>>, vector<1x128x128xf32>
    %18 = vector.shape_cast %17 : vector<1x128x128xf32> to vector<128x128xf32>
    %c2_15 = arith.constant 2 : index
    %c0_16 = arith.constant 0 : index
    %19 = vector.load %arg3[%c2_15, %c0_16] : memref<3x128xf32, #tpu.memory_space<vmem>>, vector<1x128xf32>
    %cst_17 = arith.constant dense<0.000000e+00> : vector<128x128xf32>
    %20 = tpu.matmul %16, %18, %cst_17 {dimension_numbers = #tpu.dot_dimension_numbers<[1], [0], [0], [1], [0, 0, 1, 1], [], []>} : vector<128x128xf32>, vector<128x128xf32>, vector<128x128xf32> -> vector<128x128xf32>
    %21 = vector.broadcast %19 : vector<1x128xf32> to vector<128x128xf32>
    %22 = arith.addf %20, %21 : vector<128x128xf32>
    %cst_18 = arith.constant 0.000000e+00 : f32
    %23 = vector.broadcast %cst_18 : f32 to vector<128x128xf32>
    %24 = arith.maximumf %22, %23 : vector<128x128xf32>
    %c0_19 = arith.constant 0 : index
    %c0_20 = arith.constant 0 : index
    %25 = vector.load %arg4[%c0_19, %c0_20] : memref<128x128xf32, #tpu.memory_space<vmem>>, vector<128x128xf32>
    tpu.vector_store %arg4[%c0_19, %c0_20], %24 {strides = array<i32>} : memref<128x128xf32, #tpu.memory_space<vmem>>, vector<128x128xf32>,
    return
  }
  func.func @transform_0(%arg0: i32) -> (i32, i32) {
    %c0_i32 = arith.constant 0 : i32
    %c0_i32_0 = arith.constant 0 : i32
    return %arg0, %c0_i32 : i32, i32
  }
  func.func @transform_1(%arg0: i32) -> (i32, i32, i32) {
    %c0_i32 = arith.constant 0 : i32
    %c0_i32_0 = arith.constant 0 : i32
    %c0_i32_1 = arith.constant 0 : i32
    %c0_i32_2 = arith.constant 0 : i32
    return %c0_i32, %c0_i32_0, %c0_i32_1 : i32, i32, i32
  }
  func.func @transform_2(%arg0: i32) -> (i32, i32) {
    %c0_i32 = arith.constant 0 : i32
    %c0_i32_0 = arith.constant 0 : i32
    %c0_i32_1 = arith.constant 0 : i32
    return %c0_i32, %c0_i32_0 : i32, i32
  }
  func.func @transform_3(%arg0: i32) -> (i32, i32) {
    %c0_i32 = arith.constant 0 : i32
    %c0_i32_0 = arith.constant 0 : i32
    return %arg0, %c0_i32 : i32, i32
  }
}

</mosaic_0001>

<llo_original>
// kernel: tpu_custom_call.1
$region0: #{tpu_custom_call.1}
  #allocation0 [shape = 'u32[]', space=smem, size = 0x4, offset = 0x4, fixed_abs, tag = 'smem constant byte address 0x4 - core index']
  #allocation1 [shape = 'u32[72,128]{1,0:T(1,128)}', space=vmem, size = 0x9000, scoped, tag = 'internal scratch']
  %s0 = inlined_call_operand.hbm [shape: f32[128,128], index: 0, kind: input, shape index: {}]
  %s1 = inlined_call_operand.hbm [shape: f32[3,128,128], index: 1, kind: input, shape index: {}]
  %s2 = inlined_call_operand.hbm [shape: f32[3,128], index: 2, kind: input, shape index: {}]
  %s3 = inlined_call_operand.hbm [shape: f32[128,128], index: 3, kind: output, shape index: {}]
  %s4 = sld [smem:[#allocation0]]
  $region34: #{tpu_custom_call.1} parent=0
    _
  %s6 = ssub.s32 1, %s4
  %s7 = scalar_select 0, %s6, %s4
  $region1: #{tpu_custom_call.1} parent=0
    #allocation2 [shape = 'u8[65536]{0}', space=vmem, size = 0x10000, scoped, tag = 'input window, operand 0, single buffered']
    #allocation3 [shape = 's32[1]{0}', space=sflag, size = 0x4, scoped, tag = 'scoped memory for tpu_custom_call.1']
    #allocation4 [shape = 's32[1]{0}', space=sflag, size = 0x4, scoped, tag = 'scoped memory for tpu_custom_call.1']
    #allocation5 [shape = 'u8[196608]{0}', space=vmem, size = 0x30000, scoped, tag = 'input window, operand 1, single buffered']
    #allocation6 [shape = 's32[1]{0}', space=sflag, size = 0x4, scoped, tag = 'scoped memory for tpu_custom_call.1']
    #allocation7 [shape = 'u8[2048]{0}', space=vmem, size = 0x800, scoped, tag = 'input window, operand 2, single buffered']
    #allocation8 [shape = 'u8[65536]{0}', space=vmem, size = 0x10000, scoped, tag = 'output window, operand 0, single buffered']
    %8 = vsyncpa [#allocation3], 0
    %9 = vsyncpa [#allocation6], 0
    %10 = vsyncpa [#allocation4], 0
    // Predicated region
    $region2: #{tpu_custom_call.1} parent=1 // pred_check
      _
    $region3: #{tpu_custom_call.1} parent=1 // pred_check_branch
      %12 = sbr.rel (0) target = $region5
    $region4: #{tpu_custom_call.1} parent=1 // pred_region
      %14 = vsyncadd [#allocation3], 0
      %s15 = sshll.u32 %s0, 4
      %s16 = int_to_ptr.hbm [resolvable:$true] %s15
      %s17 = sshll.u32 [#allocation2], 4
      %s18 = int_to_ptr.vmem [resolvable:$true] %s17
      %23 = dma.hbm_to_vmem [thread:$0]  %s16, 2048, %s18, [#allocation3], 128, 128, 8
    $region5: #{tpu_custom_call.1} parent=1 // pred_fallthru
      _
    // Predicated region
    $region6: #{tpu_custom_call.1} parent=1 // pred_check
      _
    $region7: #{tpu_custom_call.1} parent=1 // pred_check_branch
      %25 = sbr.rel (0) target = $region9
    $region8: #{tpu_custom_call.1} parent=1 // pred_region
      %27 = vsyncadd [#allocation6], 0
      %s28 = sshll.u32 %s1, 4
      %s29 = int_to_ptr.hbm [resolvable:$true] %s28
      %s30 = sshll.u32 [#allocation5], 4
      %s31 = int_to_ptr.vmem [resolvable:$true] %s30
      %36 = dma.hbm_to_vmem [thread:$0]  %s29, 6144, %s31, [#allocation6], 128, 128, 8
    $region9: #{tpu_custom_call.1} parent=1 // pred_fallthru
      _
    // Predicated region
    $region10: #{tpu_custom_call.1} parent=1 // pred_check
      _
    $region11: #{tpu_custom_call.1} parent=1 // pred_check_branch
      %38 = sbr.rel (0) target = $region13
    $region12: #{tpu_custom_call.1} parent=1 // pred_region
      %40 = vsyncadd [#allocation6], 0
      %s42 = sshll.u32 %s2, 4
      %s43 = int_to_ptr.hbm [resolvable:$true] %s42
      %s44 = sshll.u32 [#allocation7], 4
      %s45 = int_to_ptr.vmem [resolvable:$true] %s44
      %47 = dma.hbm_to_vmem [thread:$0]  %s43, 64, %s45, [#allocation6]
    $region13: #{tpu_custom_call.1} parent=1 // pred_fallthru
      _
    // Predicated region
    $region14: #{tpu_custom_call.1} parent=1 // pred_check
      _
    $region15: #{tpu_custom_call.1} parent=1 // pred_check_branch
      %49 = sbr.rel (0) target = $region17
    $region16: #{tpu_custom_call.1} parent=1 // pred_region
      %51 = dma.done [#allocation3], 2048
    $region17: #{tpu_custom_call.1} parent=1 // pred_fallthru
      _
    // Predicated region
    $region18: #{tpu_custom_call.1} parent=1 // pred_check
      _
    $region19: #{tpu_custom_call.1} parent=1 // pred_check_branch
      %53 = sbr.rel (0) target = $region21
    $region20: #{tpu_custom_call.1} parent=1 // pred_region
      %55 = dma.done [#allocation6], 6144
    $region21: #{tpu_custom_call.1} parent=1 // pred_fallthru
      _
    // Predicated region
    $region22: #{tpu_custom_call.1} parent=1 // pred_check
      _
    $region23: #{tpu_custom_call.1} parent=1 // pred_check_branch
      %57 = sbr.rel (0) target = $region25
    $region24: #{tpu_custom_call.1} parent=1 // pred_region
      %59 = dma.done [#allocation6], 64
    $region25: #{tpu_custom_call.1} parent=1 // pred_fallthru
      _
    %v60 = vld [vmem:[#allocation2] sm:$0xff]
    %v61 = vld [vmem:[#allocation2 + $0x8] sm:$0xff]
    %v62 = vld [vmem:[#allocation2 + $0x10] sm:$0xff]
    %v63 = vld [vmem:[#allocation2 + $0x18] sm:$0xff]
    %v64 = vld [vmem:[#allocation2 + $0x20] sm:$0xff]
    %v65 = vld [vmem:[#allocation2 + $0x28] sm:$0xff]
    %v66 = vld [vmem:[#allocation2 + $0x30] sm:$0xff]
    %v67 = vld [vmem:[#allocation2 + $0x38] sm:$0xff]
    %v68 = vld [vmem:[#allocation2 + $0x40] sm:$0xff]
    %v69 = vld [vmem:[#allocation2 + $0x48] sm:$0xff]
    %v70 = vld [vmem:[#allocation2 + $0x50] sm:$0xff]
    %v71 = vld [vmem:[#allocation2 + $0x58] sm:$0xff]
    %v72 = vld [vmem:[#allocation2 + $0x60] sm:$0xff]
    %v73 = vld [vmem:[#allocation2 + $0x68] sm:$0xff]
    %v74 = vld [vmem:[#allocation2 + $0x70] sm:$0xff]
    %v75 = vld [vmem:[#allocation2 + $0x78] sm:$0xff]
    %v76 = vld [vmem:[#allocation5] sm:$0xff]
    %v77 = vld [vmem:[#allocation5 + $0x8] sm:$0xff]
    %v78 = vld [vmem:[#allocation5 + $0x10] sm:$0xff]
    %v79 = vld [vmem:[#allocation5 + $0x18] sm:$0xff]
    %v80 = vld [vmem:[#allocation5 + $0x20] sm:$0xff]
    %v81 = vld [vmem:[#allocation5 + $0x28] sm:$0xff]
    %v82 = vld [vmem:[#allocation5 + $0x30] sm:$0xff]
    %v83 = vld [vmem:[#allocation5 + $0x38] sm:$0xff]
    %v84 = vld [vmem:[#allocation5 + $0x40] sm:$0xff]
    %v85 = vld [vmem:[#allocation5 + $0x48] sm:$0xff]
    %v86 = vld [vmem:[#allocation5 + $0x50] sm:$0xff]
    %v87 = vld [vmem:[#allocation5 + $0x58] sm:$0xff]
    %v88 = vld [vmem:[#allocation5 + $0x60] sm:$0xff]
    %v89 = vld [vmem:[#allocation5 + $0x68] sm:$0xff]
    %v90 = vld [vmem:[#allocation5 + $0x70] sm:$0xff]
    %v91 = vld [vmem:[#allocation5 + $0x78] sm:$0xff]
    %v92 = vld [vmem:[#allocation7] sm:$0x1]
    %v93 = vperm.slane %v92, 0
    %94 = vmatpush.msra.mxu0 %v91
    %95 = vmatpush.msra.mxu0 %v90
    %96 = vmatpush.msra.mxu0 %v89
    %97 = vmatpush.msra.mxu0 %v88
    %98 = vmatpush.msra.mxu0 %v87
    %99 = vmatpush.msra.mxu0 %v86
    %100 = vmatpush.msra.mxu0 %v85
    %101 = vmatpush.msra.mxu0 %v84
    %102 = vmatpush.msra.mxu0 %v83
    %103 = vmatpush.msra.mxu0 %v82
    %104 = vmatpush.msra.mxu0 %v81
    %105 = vmatpush.msra.mxu0 %v80
    %106 = vmatpush.msra.mxu0 %v79
    %107 = vmatpush.msra.mxu0 %v78
    %108 = vmatpush.msra.mxu0 %v77
    %109 = vmatpush.msra.mxu0 %v76
    %110 = vmatmul.f32.gmra.mxu0 %v60
    %v111 = vpop.f32.mrf.mxu0
    %v112 = vadd.f32 %v93, %v111
    %113 = vmatmul.f32.gmra.mxu0 %v61
    %v114 = vpop.f32.mrf.mxu0
    %v115 = vadd.f32 %v93, %v114
    %116 = vmatmul.f32.gmra.mxu0 %v62
    %v117 = vpop.f32.mrf.mxu0
    %v118 = vadd.f32 %v93, %v117
    %119 = vmatmul.f32.gmra.mxu0 %v63
    %v120 = vpop.f32.mrf.mxu0
    %v121 = vadd.f32 %v93, %v120
    %122 = vmatmul.f32.gmra.mxu0 %v64
    %v123 = vpop.f32.mrf.mxu0
    %v124 = vadd.f32 %v93, %v123
    %125 = vmatmul.f32.gmra.mxu0 %v65
    %v126 = vpop.f32.mrf.mxu0
    %v127 = vadd.f32 %v93, %v126
    %128 = vmatmul.f32.gmra.mxu0 %v66
    %v129 = vpop.f32.mrf.mxu0
    %v130 = vadd.f32 %v93, %v129
    %131 = vmatmul.f32.gmra.mxu0 %v67
    %v132 = vpop.f32.mrf.mxu0
    %v133 = vadd.f32 %v93, %v132
    %134 = vmatmul.f32.gmra.mxu0 %v68
    %v135 = vpop.f32.mrf.mxu0
    %v136 = vadd.f32 %v93, %v135
    %137 = vmatmul.f32.gmra.mxu0 %v69
    %v138 = vpop.f32.mrf.mxu0
    %v139 = vadd.f32 %v93, %v138
    %140 = vmatmul.f32.gmra.mxu0 %v70
    %v141 = vpop.f32.mrf.mxu0
    %v142 = vadd.f32 %v93, %v141
    %143 = vmatmul.f32.gmra.mxu0 %v71
    %v144 = vpop.f32.mrf.mxu0
    %v145 = vadd.f32 %v93, %v144
    %146 = vmatmul.f32.gmra.mxu0 %v72
    %v147 = vpop.f32.mrf.mxu0
    %v148 = vadd.f32 %v93, %v147
    %149 = vmatmul.f32.gmra.mxu0 %v73
    %v150 = vpop.f32.mrf.mxu0
    %v151 = vadd.f32 %v93, %v150
    %152 = vmatmul.f32.gmra.mxu0 %v74
    %v153 = vpop.f32.mrf.mxu0
    %v154 = vadd.f32 %v93, %v153
    %155 = vmatmul.f32.gmra.mxu0 %v75
    %v156 = vpop.f32.mrf.mxu0
    %v157 = vadd.f32 %v93, %v156
    %158 = vdwg.mxu0
    %v159 = vmax.f32 %v112, 0.0
    %v160 = vmax.f32 %v115, 0.0
    %v161 = vmax.f32 %v118, 0.0
    %v162 = vmax.f32 %v121, 0.0
    %v163 = vmax.f32 %v124, 0.0
    %v164 = vmax.f32 %v127, 0.0
    %v165 = vmax.f32 %v130, 0.0
    %v166 = vmax.f32 %v133, 0.0
    %v167 = vmax.f32 %v136, 0.0
    %v168 = vmax.f32 %v139, 0.0
    %v169 = vmax.f32 %v142, 0.0
    %v170 = vmax.f32 %v145, 0.0
    %v171 = vmax.f32 %v148, 0.0
    %v172 = vmax.f32 %v151, 0.0
    %v173 = vmax.f32 %v154, 0.0
    %v174 = vmax.f32 %v157, 0.0
    %s175 = scalar_lea.vmem [#allocation5], 128
    %v176 = vld [vmem:[%s175] sm:$0xff]
    %v177 = vld [vmem:[%s175 + $0x8] sm:$0xff]
    %v178 = vld [vmem:[%s175 + $0x10] sm:$0xff]
    %v179 = vld [vmem:[%s175 + $0x18] sm:$0xff]
    %v180 = vld [vmem:[%s175 + $0x20] sm:$0xff]
    %v181 = vld [vmem:[%s175 + $0x28] sm:$0xff]
    %v182 = vld [vmem:[%s175 + $0x30] sm:$0xff]
    %v183 = vld [vmem:[%s175 + $0x38] sm:$0xff]
    %v184 = vld [vmem:[%s175 + $0x40] sm:$0xff]
    %v185 = vld [vmem:[%s175 + $0x48] sm:$0xff]
    %v186 = vld [vmem:[%s175 + $0x50] sm:$0xff]
    %v187 = vld [vmem:[%s175 + $0x58] sm:$0xff]
    %v188 = vld [vmem:[%s175 + $0x60] sm:$0xff]
    %v189 = vld [vmem:[%s175 + $0x68] sm:$0xff]
    %v190 = vld [vmem:[%s175 + $0x70] sm:$0xff]
    %v191 = vld [vmem:[%s175 + $0x78] sm:$0xff]
    %v192 = vld [vmem:[#allocation7 + $0x1] sm:$0x1]
    %v193 = vperm.slane %v192, 0
    %194 = vmatpush.msra.mxu0 %v191
    %195 = vmatpush.msra.mxu0 %v190
    %196 = vmatpush.msra.mxu0 %v189
    %197 = vmatpush.msra.mxu0 %v188
    %198 = vmatpush.msra.mxu0 %v187
    %199 = vmatpush.msra.mxu0 %v186
    %200 = vmatpush.msra.mxu0 %v185
    %201 = vmatpush.msra.mxu0 %v184
    %202 = vmatpush.msra.mxu0 %v183
    %203 = vmatpush.msra.mxu0 %v182
    %204 = vmatpush.msra.mxu0 %v181
    %205 = vmatpush.msra.mxu0 %v180
    %206 = vmatpush.msra.mxu0 %v179
    %207 = vmatpush.msra.mxu0 %v178
    %208 = vmatpush.msra.mxu0 %v177
    %209 = vmatpush.msra.mxu0 %v176
    %210 = vmatmul.f32.gmra.mxu0 %v159
    %v211 = vpop.f32.mrf.mxu0
    %v212 = vadd.f32 %v193, %v211
    %213 = vmatmul.f32.gmra.mxu0 %v160
    %v214 = vpop.f32.mrf.mxu0
    %v215 = vadd.f32 %v193, %v214
    %216 = vmatmul.f32.gmra.mxu0 %v161
    %v217 = vpop.f32.mrf.mxu0
    %v218 = vadd.f32 %v193, %v217
    %219 = vmatmul.f32.gmra.mxu0 %v162
    %v220 = vpop.f32.mrf.mxu0
    %v221 = vadd.f32 %v193, %v220
    %222 = vmatmul.f32.gmra.mxu0 %v163
    %v223 = vpop.f32.mrf.mxu0
    %v224 = vadd.f32 %v193, %v223
    %225 = vmatmul.f32.gmra.mxu0 %v164
    %v226 = vpop.f32.mrf.mxu0
    %v227 = vadd.f32 %v193, %v226
    %228 = vmatmul.f32.gmra.mxu0 %v165
    %v229 = vpop.f32.mrf.mxu0
    %v230 = vadd.f32 %v193, %v229
    %231 = vmatmul.f32.gmra.mxu0 %v166
    %v232 = vpop.f32.mrf.mxu0
    %v233 = vadd.f32 %v193, %v232
    %234 = vmatmul.f32.gmra.mxu0 %v167
    %v235 = vpop.f32.mrf.mxu0
    %v236 = vadd.f32 %v193, %v235
    %237 = vmatmul.f32.gmra.mxu0 %v168
    %v238 = vpop.f32.mrf.mxu0
    %v239 = vadd.f32 %v193, %v238
    %240 = vmatmul.f32.gmra.mxu0 %v169
    %v241 = vpop.f32.mrf.mxu0
    %v242 = vadd.f32 %v193, %v241
    %243 = vmatmul.f32.gmra.mxu0 %v170
    %v244 = vpop.f32.mrf.mxu0
    %v245 = vadd.f32 %v193, %v244
    %246 = vmatmul.f32.gmra.mxu0 %v171
    %v247 = vpop.f32.mrf.mxu0
    %v248 = vadd.f32 %v193, %v247
    %249 = vmatmul.f32.gmra.mxu0 %v172
    %v250 = vpop.f32.mrf.mxu0
    %v251 = vadd.f32 %v193, %v250
    %252 = vmatmul.f32.gmra.mxu0 %v173
    %v253 = vpop.f32.mrf.mxu0
    %v254 = vadd.f32 %v193, %v253
    %255 = vmatmul.f32.gmra.mxu0 %v174
    %v256 = vpop.f32.mrf.mxu0
    %v257 = vadd.f32 %v193, %v256
    %258 = vdwg.mxu0
    %v259 = vmax.f32 %v212, 0.0
    %v260 = vmax.f32 %v215, 0.0
    %v261 = vmax.f32 %v218, 0.0
    %v262 = vmax.f32 %v221, 0.0
    %v263 = vmax.f32 %v224, 0.0
    %v264 = vmax.f32 %v227, 0.0
    %v265 = vmax.f32 %v230, 0.0
    %v266 = vmax.f32 %v233, 0.0
    %v267 = vmax.f32 %v236, 0.0
    %v268 = vmax.f32 %v239, 0.0
    %v269 = vmax.f32 %v242, 0.0
    %v270 = vmax.f32 %v245, 0.0
    %v271 = vmax.f32 %v248, 0.0
    %v272 = vmax.f32 %v251, 0.0
    %v273 = vmax.f32 %v254, 0.0
    %v274 = vmax.f32 %v257, 0.0
    %s275 = scalar_lea.vmem [#allocation5], 256
    %v276 = vld [vmem:[%s275] sm:$0xff]
    %v277 = vld [vmem:[%s275 + $0x8] sm:$0xff]
    %v278 = vld [vmem:[%s275 + $0x10] sm:$0xff]
    %v279 = vld [vmem:[%s275 + $0x18] sm:$0xff]
    %v280 = vld [vmem:[%s275 + $0x20] sm:$0xff]
    %v281 = vld [vmem:[%s275 + $0x28] sm:$0xff]
    %v282 = vld [vmem:[%s275 + $0x30] sm:$0xff]
    %v283 = vld [vmem:[%s275 + $0x38] sm:$0xff]
    %v284 = vld [vmem:[%s275 + $0x40] sm:$0xff]
    %v285 = vld [vmem:[%s275 + $0x48] sm:$0xff]
    %v286 = vld [vmem:[%s275 + $0x50] sm:$0xff]
    %v287 = vld [vmem:[%s275 + $0x58] sm:$0xff]
    %v288 = vld [vmem:[%s275 + $0x60] sm:$0xff]
    %v289 = vld [vmem:[%s275 + $0x68] sm:$0xff]
    %v290 = vld [vmem:[%s275 + $0x70] sm:$0xff]
    %v291 = vld [vmem:[%s275 + $0x78] sm:$0xff]
    %v292 = vld [vmem:[#allocation7 + $0x2] sm:$0x1]
    %v293 = vperm.slane %v292, 0
    %294 = vmatpush.msra.mxu0 %v291
    %295 = vmatpush.msra.mxu0 %v290
    %296 = vmatpush.msra.mxu0 %v289
    %297 = vmatpush.msra.mxu0 %v288
    %298 = vmatpush.msra.mxu0 %v287
    %299 = vmatpush.msra.mxu0 %v286
    %300 = vmatpush.msra.mxu0 %v285
    %301 = vmatpush.msra.mxu0 %v284
    %302 = vmatpush.msra.mxu0 %v283
    %303 = vmatpush.msra.mxu0 %v282
    %304 = vmatpush.msra.mxu0 %v281
    %305 = vmatpush.msra.mxu0 %v280
    %306 = vmatpush.msra.mxu0 %v279
    %307 = vmatpush.msra.mxu0 %v278
    %308 = vmatpush.msra.mxu0 %v277
    %309 = vmatpush.msra.mxu0 %v276
    %310 = vmatmul.f32.gmra.mxu0 %v259
    %v311 = vpop.f32.mrf.mxu0
    %v312 = vadd.f32 %v293, %v311
    %313 = vmatmul.f32.gmra.mxu0 %v260
    %v314 = vpop.f32.mrf.mxu0
    %v315 = vadd.f32 %v293, %v314
    %316 = vmatmul.f32.gmra.mxu0 %v261
    %v317 = vpop.f32.mrf.mxu0
    %v318 = vadd.f32 %v293, %v317
    %319 = vmatmul.f32.gmra.mxu0 %v262
    %v320 = vpop.f32.mrf.mxu0
    %v321 = vadd.f32 %v293, %v320
    %322 = vmatmul.f32.gmra.mxu0 %v263
    %v323 = vpop.f32.mrf.mxu0
    %v324 = vadd.f32 %v293, %v323
    %325 = vmatmul.f32.gmra.mxu0 %v264
    %v326 = vpop.f32.mrf.mxu0
    %v327 = vadd.f32 %v293, %v326
    %328 = vmatmul.f32.gmra.mxu0 %v265
    %v329 = vpop.f32.mrf.mxu0
    %v330 = vadd.f32 %v293, %v329
    %331 = vmatmul.f32.gmra.mxu0 %v266
    %v332 = vpop.f32.mrf.mxu0
    %v333 = vadd.f32 %v293, %v332
    %334 = vmatmul.f32.gmra.mxu0 %v267
    %v335 = vpop.f32.mrf.mxu0
    %v336 = vadd.f32 %v293, %v335
    %337 = vmatmul.f32.gmra.mxu0 %v268
    %v338 = vpop.f32.mrf.mxu0
    %v339 = vadd.f32 %v293, %v338
    %340 = vmatmul.f32.gmra.mxu0 %v269
    %v341 = vpop.f32.mrf.mxu0
    %v342 = vadd.f32 %v293, %v341
    %343 = vmatmul.f32.gmra.mxu0 %v270
    %v344 = vpop.f32.mrf.mxu0
    %v345 = vadd.f32 %v293, %v344
    %346 = vmatmul.f32.gmra.mxu0 %v271
    %v347 = vpop.f32.mrf.mxu0
    %v348 = vadd.f32 %v293, %v347
    %349 = vmatmul.f32.gmra.mxu0 %v272
    %v350 = vpop.f32.mrf.mxu0
    %v351 = vadd.f32 %v293, %v350
    %352 = vmatmul.f32.gmra.mxu0 %v273
    %v353 = vpop.f32.mrf.mxu0
    %v354 = vadd.f32 %v293, %v353
    %355 = vmatmul.f32.gmra.mxu0 %v274
    %v356 = vpop.f32.mrf.mxu0
    %v357 = vadd.f32 %v293, %v356
    %358 = vdwg.mxu0
    %v359 = vmax.f32 %v312, 0.0
    %v360 = vmax.f32 %v315, 0.0
    %v361 = vmax.f32 %v318, 0.0
    %v362 = vmax.f32 %v321, 0.0
    %v363 = vmax.f32 %v324, 0.0
    %v364 = vmax.f32 %v327, 0.0
    %v365 = vmax.f32 %v330, 0.0
    %v366 = vmax.f32 %v333, 0.0
    %v367 = vmax.f32 %v336, 0.0
    %v368 = vmax.f32 %v339, 0.0
    %v369 = vmax.f32 %v342, 0.0
    %v370 = vmax.f32 %v345, 0.0
    %v371 = vmax.f32 %v348, 0.0
    %v372 = vmax.f32 %v351, 0.0
    %v373 = vmax.f32 %v354, 0.0
    %v374 = vmax.f32 %v357, 0.0
    %375 = vst [vmem:[#allocation8] sm:$0xff] %v359
    %376 = vst [vmem:[#allocation8 + $0x8] sm:$0xff] %v360
    %377 = vst [vmem:[#allocation8 + $0x10] sm:$0xff] %v361
    %378 = vst [vmem:[#allocation8 + $0x18] sm:$0xff] %v362
    %379 = vst [vmem:[#allocation8 + $0x20] sm:$0xff] %v363
    %380 = vst [vmem:[#allocation8 + $0x28] sm:$0xff] %v364
    %381 = vst [vmem:[#allocation8 + $0x30] sm:$0xff] %v365
    %382 = vst [vmem:[#allocation8 + $0x38] sm:$0xff] %v366
    %383 = vst [vmem:[#allocation8 + $0x40] sm:$0xff] %v367
    %384 = vst [vmem:[#allocation8 + $0x48] sm:$0xff] %v368
    %385 = vst [vmem:[#allocation8 + $0x50] sm:$0xff] %v369
    %386 = vst [vmem:[#allocation8 + $0x58] sm:$0xff] %v370
    %387 = vst [vmem:[#allocation8 + $0x60] sm:$0xff] %v371
    %388 = vst [vmem:[#allocation8 + $0x68] sm:$0xff] %v372
    %389 = vst [vmem:[#allocation8 + $0x70] sm:$0xff] %v373
    %390 = vst [vmem:[#allocation8 + $0x78] sm:$0xff] %v374
    // Predicated region
    $region26: #{tpu_custom_call.1} parent=1 // pred_check
      _
    $region27: #{tpu_custom_call.1} parent=1 // pred_check_branch
      %392 = sbr.rel (0) target = $region29
    $region28: #{tpu_custom_call.1} parent=1 // pred_region
      %394 = vsyncadd [#allocation4], 0
      %s395 = sshll.u32 [#allocation8], 4
      %s396 = int_to_ptr.vmem [resolvable:$true] %s395
      %s397 = sshll.u32 %s3, 4
      %s398 = int_to_ptr.hbm [resolvable:$true] %s397
      %403 = dma.vmem_to_hbm [thread:$0]  %s396, 2048, %s398, [#allocation4], 128, 128, 8
    $region29: #{tpu_custom_call.1} parent=1 // pred_fallthru
      _
    // Predicated region
    $region30: #{tpu_custom_call.1} parent=1 // pred_check
      _
    $region31: #{tpu_custom_call.1} parent=1 // pred_check_branch
      %405 = sbr.rel (0) target = $region33
    $region32: #{tpu_custom_call.1} parent=1 // pred_region
      %407 = dma.done [#allocation4], 2048
    $region33: #{tpu_custom_call.1} parent=1 // pred_fallthru
      _
    %408 = vsyncpa [#allocation3], 1
    %409 = vsyncpa [#allocation6], 1
    %410 = vsyncpa [#allocation4], 1

</llo_original>
